<compile_context>
chip_gen: v7x
topology: tpu7x:2x2x1
jax: 0.10.0
libtpu: 0.0.40
codegen_flags: <defaults>
</compile_context>

<pallas_src>
import functools

import jax
import jax.numpy as jnp
from jax.experimental import pallas as pl
from jax.experimental.pallas import tpu as pltpu


_VMEM_BUDGET = 36 * 1024 * 1024   # target bytes in flight (double-buffered tiles)
_VMEM_LIMIT = 48 * 1024 * 1024    # scoped-VMEM limit handed to Mosaic (< v7x 64 MiB)


def _round_up(a: int, b: int) -> int:
    return ((a + b - 1) // b) * b


def _choose_tile(dim: int, target: int, align: int):
    """Pick (tile, padded_dim): tile is a multiple of `align`, <= target,
    divides padded_dim exactly, and keeps padding waste small (big tiles
    preferred; accept up to 12.5% padded rows/cols)."""
    target = max(align, (target // align) * align)
    dim_a = _round_up(dim, align)
    if dim_a <= target:
        return dim_a, dim_a                      # one block covers the dim
    best_t, best_p = align, dim_a                # minimal-padding fallback
    for t in range(target, align - 1, -align):   # largest tile first
        padded = _round_up(dim, t)
        if (padded - dim) / padded <= 0.125:
            return t, padded
        if padded < best_p or (padded == best_p and t > best_t):
            best_t, best_p = t, padded
    return best_t, best_p


def _tile_vmem_bytes(tm, tn, tk, x_isz, w_isz, has_bias):
    # Double-buffered input tiles + f32 output tile (+ tiny resident bias row).
    return (2 * tm * tk * x_isz
            + 2 * tk * tn * w_isz
            + 2 * tm * tn * 4
            + (2 * tn * 4 if has_bias else 0))


def _linear_kernel(x_ref, w_ref, *rest, compute_dtype, has_bias, multi_k):
    if has_bias:
        b_ref, o_ref = rest
    else:
        (o_ref,) = rest

    contrib = jnp.dot(
        x_ref[...].astype(compute_dtype),
        w_ref[...].astype(compute_dtype),
        preferred_element_type=jnp.float32,
    )

    if not multi_k:
        # Whole K reduction done in one shot: no init/finalize branches.
        if has_bias:
            o_ref[...] = contrib + b_ref[...]
        else:
            o_ref[...] = contrib
    else:
        k = pl.program_id(2)

        @pl.when(k == 0)
        def _init():
            if has_bias:
                o_ref[...] = jnp.broadcast_to(b_ref[...], o_ref.shape)
            else:
                o_ref[...] = jnp.zeros_like(o_ref)

        # Output block index is K-invariant -> stays resident in VMEM; no
        # separate f32 accumulator scratch is needed (output is f32).
        o_ref[...] += contrib


@functools.partial(
    jax.jit,
    static_argnames=("compute_dtype", "tm_target", "tn_target", "tk_target"),
)
def linear_forward(
    x,
    weight,
    bias=None,
    *,
    compute_dtype=jnp.bfloat16,
    tm_target=1024,
    tn_target=2048,
    tk_target=512,
):
    """y = x @ weight (+ bias).  x:(M,K)  weight:(K,N)  bias:(N,) or None."""
    M, K = x.shape
    K2, N = weight.shape
    assert K == K2, "in_features mismatch"
    out_dtype = x.dtype
    has_bias = bias is not None

    x_isz = jnp.dtype(x.dtype).itemsize
    w_isz = jnp.dtype(weight.dtype).itemsize

    # ---- tile targets: shrink until the worst-case footprint fits VMEM ----
    tm_t, tn_t, tk_t = tm_target, tn_target, tk_target
    while _tile_vmem_bytes(tm_t, tn_t, tk_t, x_isz, w_isz, has_bias) > _VMEM_BUDGET:
        if tk_t > 512:
            tk_t //= 2
        elif tn_t > 256:
            tn_t //= 2
        elif tm_t > 128:
            tm_t //= 2
        else:
            break

    # Padding-aware tile selection. tm aligned to 16 (bf16 packs 2 rows/sublane).
    tm, Mp = _choose_tile(M, tm_t, 16)
    tn, Np = _choose_tile(N, tn_t, 128)

    # Small-M problems: split N in two so the "parallel" j axis can be sharded
    # across v7x's two TensorCores (harmless on single-TC v5e/v6e).
    if Mp == tm and Mp <= 256 and Np == tn and Np % 256 == 0:
        tn = Np // 2

    # Drop the K grid axis entirely when the full reduction fits the budget.
    Kp_full = _round_up(K, 128)
    if (Kp_full <= max(tk_t, 128)
            and _tile_vmem_bytes(tm, tn, Kp_full, x_isz, w_isz, has_bias)
            <= _VMEM_BUDGET):
        tk, Kp, multi_k = Kp_full, Kp_full, False
    else:
        (tk, Kp), multi_k = _choose_tile(K, tk_t, 128), True

    # ---- operands: pad (fused with the cast) only when actually needed ----
    if (Mp, Kp) != (M, K):
        x_in = jnp.pad(x.astype(compute_dtype), ((0, Mp - M), (0, Kp - K)))
    else:
        x_in = x                      # cast happens per-block inside the kernel
    if (Kp, Np) != (K, N):
        w_in = jnp.pad(weight.astype(compute_dtype), ((0, Kp - K), (0, Np - N)))
    else:
        w_in = weight

    operands = [x_in, w_in]
    if has_bias:
        b_in = bias.astype(jnp.float32).reshape(1, N)
        if Np != N:
            b_in = jnp.pad(b_in, ((0, 0), (0, Np - N)))
        operands.append(b_in)

    # ---- grid & specs (reduction axis last when present) ----
    if multi_k:
        grid = (Mp // tm, Np // tn, Kp // tk)
        x_spec = pl.BlockSpec((tm, tk), lambda i, j, k: (i, k))
        w_spec = pl.BlockSpec((tk, tn), lambda i, j, k: (k, j))
        b_spec = pl.BlockSpec((1, tn), lambda i, j, k: (0, j))
        o_spec = pl.BlockSpec((tm, tn), lambda i, j, k: (i, j))
        dims = ("parallel", "parallel", "arbitrary")
    else:
        grid = (Mp // tm, Np // tn)
        x_spec = pl.BlockSpec((tm, Kp), lambda i, j: (i, 0))
        w_spec = pl.BlockSpec((Kp, tn), lambda i, j: (0, j))
        b_spec = pl.BlockSpec((1, tn), lambda i, j: (0, j))
        o_spec = pl.BlockSpec((tm, tn), lambda i, j: (i, j))
        dims = ("parallel", "parallel")

    in_specs = [x_spec, w_spec] + ([b_spec] if has_bias else [])

    # bytes_accessed includes operand re-reads: x re-read Np/tn times, weight
    # re-read Mp/tm times across the output tiling.
    cost = pl.CostEstimate(
        flops=2 * M * N * K,
        transcendentals=0,
        bytes_accessed=int(
            Mp * Kp * jnp.dtype(x_in.dtype).itemsize * (Np // tn)
            + Kp * Np * jnp.dtype(w_in.dtype).itemsize * (Mp // tm)
            + Mp * Np * 4
            + (Np * 4 if has_bias else 0)
        ),
    )

    kernel = functools.partial(
        _linear_kernel,
        compute_dtype=compute_dtype,
        has_bias=has_bias,
        multi_k=multi_k,
    )

    yp = pl.pallas_call(
        kernel,
        out_shape=jax.ShapeDtypeStruct((Mp, Np), jnp.float32),
        grid_spec=pltpu.PrefetchScalarGridSpec(
            num_scalar_prefetch=0,
            grid=grid,
            in_specs=in_specs,
            out_specs=o_spec,
        ),
        compiler_params=pltpu.CompilerParams(
            dimension_semantics=dims,
            vmem_limit_bytes=_VMEM_LIMIT,
        ),
        cost_estimate=cost,
    )(*operands)

    # Slice away lane/sublane padding; cast back to the input dtype (no-op for f32).
    return yp[:M, :N].astype(out_dtype)


def make_linear_params(in_features, out_features, bias=True, key=None,
                       weight_dtype=jnp.bfloat16):
    """Mirror the PyTorch __init__:
         weight = linspace(0,1,in_features).unsqueeze(1).expand(in, out)
         bias   = randn(out_features)
    The weight is materialised once in the MXU compute dtype so the forward
    pass never needs a per-call cast/pad pass over it.
    """
    col = jnp.linspace(0.0, 1.0, in_features, dtype=jnp.float32)[:, None]
    weight = jnp.broadcast_to(col, (in_features, out_features)).astype(weight_dtype)
    b = None
    if bias:
        if key is None:
            key = jax.random.PRNGKey(0)
        b = jax.random.normal(key, (out_features,), dtype=jnp.float32)
    return weight, b


def _reference(x, weight, bias, compute_dtype):
    # Same numerics as the kernel: compute-dtype operands, f32 accumulation.
    y = jnp.dot(
        x.astype(compute_dtype),
        weight.astype(compute_dtype),
        preferred_element_type=jnp.float32,
    )
    if bias is not None:
        y = y + bias.astype(jnp.float32)[None, :]
    return y.astype(x.dtype)


if __name__ == "__main__":
    key = jax.random.PRNGKey(0)
    k_x, k_b, k_x2, k_b2 = jax.random.split(key, 4)

    # --- Case 1: module-sized shapes (batch=8, in_features=32, out_features=16) ---
    batch, in_features, out_features = 8, 32, 16
    x = jax.random.normal(k_x, (batch, in_features), dtype=jnp.float32)
    weight, bias = make_linear_params(in_features, out_features, bias=True, key=k_b)

    y = jax.block_until_ready(linear_forward(x, weight, bias))
    y_ref = _reference(x, weight, bias, jnp.bfloat16)
    assert y.shape == (batch, out_features)
    assert jnp.allclose(y, y_ref, atol=1e-2, rtol=1e-2)

    # No-bias path (reference's `if self.bias:` intent: skip when bias is None).
    y_nb = jax.block_until_ready(linear_forward(x, weight, None))
    y_nb_ref = _reference(x, weight, None, jnp.bfloat16)
    assert jnp.allclose(y_nb, y_nb_ref, atol=1e-2, rtol=1e-2)

    # --- Case 2: exercise the multi-tile (i, j, k) grid with K-accumulation ---
    M2, K2, N2 = 128, 384, 256
    x2 = jax.random.normal(k_x2, (M2, K2), dtype=jnp.float32)
    w2, b2 = make_linear_params(K2, N2, bias=True, key=k_b2)
    y2 = jax.block_until_ready(
        linear_forward(x2, w2, b2, tm_target=64, tn_target=128, tk_target=128)
    )  # grid = (2, 2, 3)
    y2_ref = _reference(x2, w2, b2, jnp.bfloat16)
    assert y2.shape == (M2, N2)
    assert jnp.allclose(y2, y2_ref, atol=1e-2, rtol=1e-2)

    print("KERNEL_OK")
</pallas_src>

<mosaic_0001>
module attributes {stable_mosaic.version = 11 : i64} {
  func.func @_linear_kernel(%arg0: i32, %arg1: i32, %arg2: memref<16x128xbf16, #tpu.memory_space<vmem>>, %arg3: memref<128x128xbf16, #tpu.memory_space<vmem>>, %arg4: memref<1x128xf32, #tpu.memory_space<vmem>>, %arg5: memref<16x128xf32, #tpu.memory_space<vmem>>) attributes {dimension_semantics = [#tpu.dimension_semantics<parallel>, #tpu.dimension_semantics<parallel>], iteration_bounds = array<i64: 1, 1>, scalar_prefetch = 0 : i64, scratch_operands = 0 : i64, tpu.core_type = #tpu.core_type<tc>, window_params = [{transform_indices = @transform_0, window_bounds = array<i64: 16, 128>}, {transform_indices = @transform_1, window_bounds = array<i64: 128, 128>}, {transform_indices = @transform_2, window_bounds = array<i64: 1, 128>}, {transform_indices = @transform_3, window_bounds = array<i64: 16, 128>}]} {
    %c0 = arith.constant 0 : index
    %c0_0 = arith.constant 0 : index
    %0 = vector.load %arg2[%c0, %c0_0] : memref<16x128xbf16, #tpu.memory_space<vmem>>, vector<16x128xbf16>
    %c0_1 = arith.constant 0 : index
    %c0_2 = arith.constant 0 : index
    %1 = vector.load %arg3[%c0_1, %c0_2] : memref<128x128xbf16, #tpu.memory_space<vmem>>, vector<128x128xbf16>
    %cst = arith.constant dense<0.000000e+00> : vector<16x128xf32>
    %2 = tpu.matmul %0, %1, %cst {dimension_numbers = #tpu.dot_dimension_numbers<[1], [0], [0], [1], [0, 0, 1, 1], [], []>} : vector<16x128xbf16>, vector<128x128xbf16>, vector<16x128xf32> -> vector<16x128xf32>
    %c0_3 = arith.constant 0 : index
    %c0_4 = arith.constant 0 : index
    %3 = vector.load %arg4[%c0_3, %c0_4] : memref<1x128xf32, #tpu.memory_space<vmem>>, vector<1x128xf32>
    %4 = vector.broadcast %3 : vector<1x128xf32> to vector<16x128xf32>
    %5 = arith.addf %2, %4 : vector<16x128xf32>
    %c0_5 = arith.constant 0 : index
    %c0_6 = arith.constant 0 : index
    %6 = vector.load %arg5[%c0_5, %c0_6] : memref<16x128xf32, #tpu.memory_space<vmem>>, vector<16x128xf32>
    tpu.vector_store %arg5[%c0_5, %c0_6], %5 {strides = array<i32>} : memref<16x128xf32, #tpu.memory_space<vmem>>, vector<16x128xf32>,
    return
  }
  func.func @transform_0(%arg0: i32, %arg1: i32) -> (i32, i32) {
    %c0_i32 = arith.constant 0 : i32
    %c0_i32_0 = arith.constant 0 : i32
    return %arg0, %c0_i32 : i32, i32
  }
  func.func @transform_1(%arg0: i32, %arg1: i32) -> (i32, i32) {
    %c0_i32 = arith.constant 0 : i32
    %c0_i32_0 = arith.constant 0 : i32
    return %c0_i32, %arg1 : i32, i32
  }
  func.func @transform_2(%arg0: i32, %arg1: i32) -> (i32, i32) {
    %c0_i32 = arith.constant 0 : i32
    %c0_i32_0 = arith.constant 0 : i32
    return %c0_i32, %arg1 : i32, i32
  }
  func.func @transform_3(%arg0: i32, %arg1: i32) -> (i32, i32) {
    %c0_i32 = arith.constant 0 : i32
    return %arg0, %arg1 : i32, i32
  }
}

</mosaic_0001>

<llo_original>
// kernel: linear_forward.1
$region0: #{linear_forward.1}
  #allocation0 [shape = 'u32[]', space=smem, size = 0x4, offset = 0x4, fixed_abs, tag = 'smem constant byte address 0x4 - core index']
  #allocation1 [shape = 'u32[144,128]{1,0:T(1,128)}', space=vmem, size = 0x12000, scoped, tag = 'internal scratch']
  %s0 = inlined_call_operand.vmem [shape: bf16[16,128], index: 0, kind: input, shape index: {}]
  %s1 = inlined_call_operand.vmem [shape: bf16[128,128], index: 1, kind: input, shape index: {}]
  %s2 = inlined_call_operand.vmem [shape: f32[1,128], index: 2, kind: input, shape index: {}]
  %s3 = inlined_call_operand.vmem [shape: f32[16,128], index: 3, kind: output, shape index: {}]
  %s4 = sld [smem:[#allocation0]]
  $region22: #{linear_forward.1} parent=0
    _
  %s6 = ssub.s32 1, %s4
  %s7 = scalar_select 0, %s6, %s4
  // Predicated region
  $region2: #{linear_forward.1} parent=0 // pred_check
    _
  $region3: #{linear_forward.1} parent=0 // pred_check_branch
    %9 = sbr.rel (0) target = $region5
  $region4: #{linear_forward.1} parent=0 // pred_region
    _
  $region5: #{linear_forward.1} parent=0 // pred_fallthru
    _
  // Predicated region
  $region6: #{linear_forward.1} parent=0 // pred_check
    _
  $region7: #{linear_forward.1} parent=0 // pred_check_branch
    %11 = sbr.rel (0) target = $region9
  $region8: #{linear_forward.1} parent=0 // pred_region
    _
  $region9: #{linear_forward.1} parent=0 // pred_fallthru
    _
  // Predicated region
  $region10: #{linear_forward.1} parent=0 // pred_check
    _
  $region11: #{linear_forward.1} parent=0 // pred_check_branch
    %13 = sbr.rel (0) target = $region13
  $region12: #{linear_forward.1} parent=0 // pred_region
    _
  $region13: #{linear_forward.1} parent=0 // pred_fallthru
    _
  %v15 = vld [vmem:[%s0] sm:$0xf]
  %v16 = vld [vmem:[%s0 + $0x4] sm:$0xf]
  %v17 = vld [vmem:[%s1] sm:$0xf]
  %v18 = vld [vmem:[%s1 + $0x4] sm:$0xf]
  %v19 = vld [vmem:[%s1 + $0x8] sm:$0xf]
  %v20 = vld [vmem:[%s1 + $0xc] sm:$0xf]
  %v21 = vld [vmem:[%s1 + $0x10] sm:$0xf]
  %v22 = vld [vmem:[%s1 + $0x14] sm:$0xf]
  %v23 = vld [vmem:[%s1 + $0x18] sm:$0xf]
  %v24 = vld [vmem:[%s1 + $0x1c] sm:$0xf]
  %v25 = vld [vmem:[%s1 + $0x20] sm:$0xf]
  %v26 = vld [vmem:[%s1 + $0x24] sm:$0xf]
  %v27 = vld [vmem:[%s1 + $0x28] sm:$0xf]
  %v28 = vld [vmem:[%s1 + $0x2c] sm:$0xf]
  %v29 = vld [vmem:[%s1 + $0x30] sm:$0xf]
  %v30 = vld [vmem:[%s1 + $0x34] sm:$0xf]
  %v31 = vld [vmem:[%s1 + $0x38] sm:$0xf]
  %v32 = vld [vmem:[%s1 + $0x3c] sm:$0xf]
  %v33 = vld [vmem:[%s2] sm:$0x1]
  %v35 = vlaneseq
  %v36 = vshrl.u32 %v35, 7
  %v37 = vsub.s32 0, %v36
  %v38 = vrot.slane %v33, %v37
  %v42 = vunpack.c.l.b16 %v15
  %v43 = vunpack.c.l.b16 %v16
  %v44 = vpack.c.b16 %v43, %v42
  %v62 = vunpack.c.l.b16 %v17
  %v63 = vunpack.c.l.b16 %v18
  %v64 = vunpack.c.l.b16 %v19
  %v65 = vunpack.c.l.b16 %v20
  %v66 = vunpack.c.l.b16 %v21
  %v67 = vunpack.c.l.b16 %v22
  %v68 = vunpack.c.l.b16 %v23
  %v69 = vunpack.c.l.b16 %v24
  %v70 = vunpack.c.l.b16 %v25
  %v71 = vunpack.c.l.b16 %v26
  %v72 = vunpack.c.l.b16 %v27
  %v73 = vunpack.c.l.b16 %v28
  %v74 = vunpack.c.l.b16 %v29
  %v75 = vunpack.c.l.b16 %v30
  %v76 = vunpack.c.l.b16 %v31
  %v77 = vunpack.c.l.b16 %v32
  %v78 = vpack.c.b16 %v63, %v62
  %v79 = vpack.c.b16 %v65, %v64
  %v80 = vpack.c.b16 %v67, %v66
  %v81 = vpack.c.b16 %v69, %v68
  %v82 = vpack.c.b16 %v71, %v70
  %v83 = vpack.c.b16 %v73, %v72
  %v84 = vpack.c.b16 %v75, %v74
  %v85 = vpack.c.b16 %v77, %v76
  %94 = vmatprep.subr.bf16.mxu0 0
  %95 = vmatpush1.bf16.msra.mxu0 %v78
  %96 = vmatprep.subr.bf16.mxu0 0
  %97 = vmatpush1.bf16.msra.mxu0 %v79
  %98 = vmatprep.subr.bf16.mxu0 0
  %99 = vmatpush1.bf16.msra.mxu0 %v80
  %100 = vmatprep.subr.bf16.mxu0 0
  %101 = vmatpush1.bf16.msra.mxu0 %v81
  %102 = vmatprep.subr.bf16.mxu0 0
  %103 = vmatpush1.bf16.msra.mxu0 %v82
  %104 = vmatprep.subr.bf16.mxu0 0
  %105 = vmatpush1.bf16.msra.mxu0 %v83
  %106 = vmatprep.subr.bf16.mxu0 0
  %107 = vmatpush1.bf16.msra.mxu0 %v84
  %108 = vmatprep.subr.bf16.mxu0 0
  %109 = vmatpush1.bf16.msra.mxu0 %v85
  %110 = vmatprep.subr.bf16.mxu0 0
  %111 = vmatpush1.bf16.msra.mxu0 0
  %112 = vmatprep.subr.bf16.mxu0 0
  %113 = vmatpush1.bf16.msra.mxu0 0
  %114 = vmatprep.subr.bf16.mxu0 0
  %115 = vmatpush1.bf16.msra.mxu0 0
  %116 = vmatprep.subr.bf16.mxu0 0
  %117 = vmatpush1.bf16.msra.mxu0 0
  %118 = vmatprep.subr.bf16.mxu0 0
  %119 = vmatpush1.bf16.msra.mxu0 0
  %120 = vmatprep.subr.bf16.mxu0 0
  %121 = vmatpush1.bf16.msra.mxu0 0
  %122 = vmatprep.subr.bf16.mxu0 0
  %123 = vmatpush1.bf16.msra.mxu0 0
  %124 = vmatprep.subr.bf16.mxu0 0
  %125 = vmatpush1.bf16.msra.mxu0 0
  %126 = vmatprep.mubr.bf16.mxu0 0
  %127 = vmatmul.mubr.bf16.gmra.mrb[0].mxu0 %v44
  %v128 = vpop.f32.mrb[0].mxu0
  %v129 = vadd.f32 %v38, %v128
  %v130 = vpop.f32.mrb[0].mxu0
  %v131 = vpop.f32.mrb[0].mxu0
  %v132 = vadd.f32 %v38, %v131
  %v133 = vpop.f32.mrb[0].mxu0
  %134 = vdwg.mxu0
  %135 = vst [vmem:[%s3] sm:$0xff] %v129
  %136 = vst [vmem:[%s3 + $0x8] sm:$0xff] %v132
  // Predicated region
  $region14: #{linear_forward.1} parent=0 // pred_check
    _
  $region15: #{linear_forward.1} parent=0 // pred_check_branch
    %138 = sbr.rel (0) target = $region17
  $region16: #{linear_forward.1} parent=0 // pred_region
    _
  $region17: #{linear_forward.1} parent=0 // pred_fallthru
    _
  // Predicated region
  $region18: #{linear_forward.1} parent=0 // pred_check
    _
  $region19: #{linear_forward.1} parent=0 // pred_check_branch
    %140 = sbr.rel (0) target = $region21
  $region20: #{linear_forward.1} parent=0 // pred_region
    _
  $region21: #{linear_forward.1} parent=0 // pred_fallthru
    _

</llo_original>
